<compile_context>
chip_gen: v7x
topology: tpu7x:2x2x1
jax: 0.10.0
libtpu: 0.0.40
codegen_flags: <defaults>
</compile_context>

<pallas_src>
import math
import functools

import jax
import jax.numpy as jnp
from jax import lax
from jax.experimental import pallas as pl
from jax.experimental.pallas import tpu as pltpu


# --------------------------------------------------------------------------- helpers

def _largest_divisor_leq(n, cap):
    cap = int(max(1, min(n, cap)))
    for d in range(cap, 0, -1):
        if n % d == 0:
            return d
    return 1


# --------------------------------------------------------------------------- conv 3x3 + ReLU

def _conv3x3_kernel(x_ref, w_ref, b_ref, o_ref, *, TR, W):
    # x_ref: (H+2, W+2, Cin)  bf16  full padded image (resident across row tiles)
    # w_ref: (9, Cin, Cout)   bf16  resident tap weights (tap = 3*dy + dx)
    # b_ref: (1, Cout)        f32
    # o_ref: (TR, W, Cout)    bf16  output rows [r*TR, r*TR + TR)
    r = pl.program_id(1)
    cout = o_ref.shape[-1]

    def body(y, carry):
        base = r * TR + y                              # absolute padded-row index
        rows3 = x_ref[pl.ds(base, 3)]                  # (3, W+2, Cin) halo rows
        acc = jnp.broadcast_to(b_ref[...], (W, cout)).astype(jnp.float32)
        for dy in range(3):
            row = rows3[dy]                            # (W+2, Cin)
            for dx in range(3):
                acc += jnp.dot(row[dx:dx + W, :], w_ref[3 * dy + dx],
                               preferred_element_type=jnp.float32)
        o_ref[y] = jnp.maximum(acc, 0.0).astype(o_ref.dtype)   # fused ReLU
        return carry

    lax.fori_loop(0, TR, body, 0)


@jax.jit
def conv3x3_relu(x, w, b):
    """x: (N,H,W,Cin) bf16/f32, w: (Cout,Cin,3,3) OIHW, b: (Cout,) -> (N,H,W,Cout) bf16."""
    N, H, W_, Cin = x.shape
    Cout = w.shape[0]

    # pad Cin up to a multiple of 8 (only matters for the first layer, Cin=3)
    pad_c = (-Cin) % 8
    if pad_c:
        x = jnp.pad(x, ((0, 0), (0, 0), (0, 0), (0, pad_c)))
        w = jnp.pad(w, ((0, 0), (0, pad_c), (0, 0), (0, 0)))
        Cin += pad_c

    xp = jnp.pad(x, ((0, 0), (1, 1), (1, 1), (0, 0))).astype(jnp.bfloat16)     # "same" pad
    w9 = jnp.transpose(w, (2, 3, 1, 0)).reshape(9, Cin, Cout).astype(jnp.bfloat16)
    b2 = b.reshape(1, Cout).astype(jnp.float32)

    # row tile: keep the (double-buffered) output block around <= ~2 MiB
    row_bytes = W_ * Cout * 2
    TR = _largest_divisor_leq(H, max(1, (2 * 1024 * 1024) // max(row_bytes, 1)))

    kernel = functools.partial(_conv3x3_kernel, TR=TR, W=W_)
    out = pl.pallas_call(
        kernel,
        out_shape=jax.ShapeDtypeStruct((N, H, W_, Cout), jnp.bfloat16),
        grid=(N, H // TR),
        in_specs=[
            # full padded image, constant over the row axis -> DMA'd once per image
            pl.BlockSpec((None, H + 2, W_ + 2, Cin), lambda n, r: (n, 0, 0, 0)),
            # all 9 tap weights resident in VMEM (constant index map)
            pl.BlockSpec((9, Cin, Cout), lambda n, r: (0, 0, 0)),
            pl.BlockSpec((1, Cout), lambda n, r: (0, 0)),
        ],
        out_specs=pl.BlockSpec((None, TR, W_, Cout), lambda n, r: (n, r, 0, 0)),
        compiler_params=pltpu.CompilerParams(
            dimension_semantics=("parallel", "parallel")),
    )(xp, w9, b2)
    return out


# --------------------------------------------------------------------------- maxpool 2x2 / 2

def _rowpool_kernel(x_ref, o_ref):
    # x_ref: (2*TRo, Wo, C) column-pair-maxed rows; o_ref: (TRo, Wo, C)
    v = x_ref[...]
    o_ref[...] = jnp.maximum(v[0::2], v[1::2])


@jax.jit
def maxpool2x2(x):
    """x: (N,H,W,C) -> (N,H/2,W/2,C), kernel=2 stride=2 (nn.MaxPool2d(2,2))."""
    N, H, W_, C = x.shape
    Ho, Wo = H // 2, W_ // 2
    # width-pair max in XLA glue (strided views, fused elementwise); height-pair max in Pallas.
    colmax = jnp.maximum(x[:, :, 0::2, :], x[:, :, 1::2, :])            # (N, H, Wo, C)

    row_bytes = 2 * Wo * C * x.dtype.itemsize
    TRo = _largest_divisor_leq(Ho, max(1, (2 * 1024 * 1024) // max(row_bytes, 1)))

    out = pl.pallas_call(
        _rowpool_kernel,
        out_shape=jax.ShapeDtypeStruct((N, Ho, Wo, C), x.dtype),
        grid=(N, Ho // TRo),
        in_specs=[pl.BlockSpec((None, 2 * TRo, Wo, C), lambda n, r: (n, r, 0, 0))],
        out_specs=pl.BlockSpec((None, TRo, Wo, C), lambda n, r: (n, r, 0, 0)),
        compiler_params=pltpu.CompilerParams(
            dimension_semantics=("parallel", "parallel")),
    )(colmax)
    return out


# --------------------------------------------------------------------------- final Linear

def _linear_kernel(x_ref, w_ref, b_ref, o_ref, acc_ref):
    k = pl.program_id(1)

    @pl.when(k == 0)
    def _():
        acc_ref[...] = jnp.broadcast_to(b_ref[...], acc_ref.shape).astype(jnp.float32)

    acc_ref[...] += jnp.dot(x_ref[...], w_ref[...], preferred_element_type=jnp.float32)

    @pl.when(k == pl.num_programs(1) - 1)
    def _():
        o_ref[...] = acc_ref[...].astype(o_ref.dtype)


@jax.jit
def linear(x, w, b):
    """x: (N,K), w: (K,F) (== torch Linear.weight.T), b: (F,) -> (N,F) f32."""
    N, K = x.shape
    F = w.shape[1]
    xb = x.astype(jnp.bfloat16)
    wb = w.astype(jnp.bfloat16)
    b2 = b.reshape(1, F).astype(jnp.float32)

    tn = _largest_divisor_leq(F, 512)
    tk = _largest_divisor_leq(K, 4096)        # big reduction tile -> few grid steps

    return pl.pallas_call(
        _linear_kernel,
        out_shape=jax.ShapeDtypeStruct((N, F), jnp.float32),
        grid=(F // tn, K // tk),
        in_specs=[
            pl.BlockSpec((N, tk), lambda j, k: (0, k)),
            pl.BlockSpec((tk, tn), lambda j, k: (k, j)),
            pl.BlockSpec((1, tn), lambda j, k: (0, j)),
        ],
        out_specs=pl.BlockSpec((N, tn), lambda j, k: (0, j)),
        scratch_shapes=[pltpu.VMEM((N, tn), jnp.float32)],
        compiler_params=pltpu.CompilerParams(
            dimension_semantics=("parallel", "arbitrary")),
    )(xb, wb, b2)


# --------------------------------------------------------------------------- Backbone

VGG16_CFG = [64, 64, 'M', 128, 128, 'M', 256, 256, 256, 'M',
             512, 512, 512, 'M', 512, 512, 512, 'M']
FEATURE_LEN = 1024


def init_params(key, in_hw):
    """Deterministic synthetic weights (He init); fc input follows the demo spatial size."""
    conv_params = []
    cin = 3
    for c in VGG16_CFG:
        if c == 'M':
            conv_params.append(('M', None, None))
        else:
            key, kw = jax.random.split(key)
            std = math.sqrt(2.0 / (cin * 9))
            w = jax.random.normal(kw, (c, cin, 3, 3), jnp.float32) * std   # PyTorch OIHW
            bb = jnp.zeros((c,), jnp.float32)
            conv_params.append(('C', w, bb))
            cin = c
    fc_in = 512 * (in_hw[0] // 32) * (in_hw[1] // 32)   # 512*12*12 for the real 384x384 input
    key, kfc = jax.random.split(key)
    w_fc = jax.random.normal(kfc, (fc_in, FEATURE_LEN), jnp.float32) * (1.0 / math.sqrt(fc_in))
    b_fc = jnp.zeros((FEATURE_LEN,), jnp.float32)
    return conv_params, (w_fc, b_fc)


def backbone_forward(x_nchw, conv_params, fc_params):
    """x_nchw: (N, 3, H, W) f32 -> (N, 1024) f32, matching Backbone.forward."""
    x = jnp.transpose(x_nchw, (0, 2, 3, 1)).astype(jnp.bfloat16)   # NCHW -> NHWC for kernels
    for kind, w, bb in conv_params:
        if kind == 'M':
            x = maxpool2x2(x)
        else:
            x = conv3x3_relu(x, w, bb)
    n = x.shape[0]
    # torch flattens NCHW: transpose back so flatten order matches net.view(N, -1)
    feat = jnp.transpose(x, (0, 3, 1, 2)).reshape(n, -1)
    w_fc, b_fc = fc_params
    return linear(feat, w_fc, b_fc)


if __name__ == "__main__":
    key = jax.random.PRNGKey(0)
    key, kx = jax.random.split(key)

    # Small demo shapes consistent with the module structure (13 convs + 5 pools + Linear):
    # batch=2, 3x64x64 -> final feature map 512x2x2 -> Linear(2048, 1024).
    N, H, W = 2, 64, 64
    x = jax.random.normal(kx, (N, 3, H, W), jnp.float32)

    conv_params, fc_params = init_params(key, (H, W))
    out = backbone_forward(x, conv_params, fc_params)
    out = jax.block_until_ready(out)

    assert out.shape == (N, FEATURE_LEN), out.shape
    assert bool(jnp.all(jnp.isfinite(out)))
    print("KERNEL_OK")
</pallas_src>

<mosaic_0001>
module attributes {stable_mosaic.version = 11 : i64} {
  func.func @_conv3x3_kernel(%arg0: i32, %arg1: i32, %arg2: memref<1x66x66x8xbf16, #tpu.memory_space<vmem>>, %arg3: memref<9x8x64xbf16, #tpu.memory_space<vmem>>, %arg4: memref<1x64xf32, #tpu.memory_space<vmem>>, %arg5: memref<1x64x64x64xbf16, #tpu.memory_space<vmem>>) attributes {dimension_semantics = [#tpu.dimension_semantics<parallel>, #tpu.dimension_semantics<parallel>], iteration_bounds = array<i64: 2, 1>, scalar_prefetch = 0 : i64, scratch_operands = 0 : i64, tpu.core_type = #tpu.core_type<tc>, window_params = [{transform_indices = @transform_0, window_bounds = array<i64: 1, 66, 66, 8>}, {pipeline_mode = #tpu.pipeline_mode<synchronous>, transform_indices = @transform_1, window_bounds = array<i64: 9, 8, 64>}, {pipeline_mode = #tpu.pipeline_mode<synchronous>, transform_indices = @transform_2, window_bounds = array<i64: 1, 64>}, {transform_indices = @transform_3, window_bounds = array<i64: 1, 64, 64, 64>}]} {
    %c0_i32 = arith.constant 0 : i32
    %c64_i32 = arith.constant 64 : i32
    %0 = arith.addi %c0_i32, %c64_i32 : i32
    %c1_i32 = arith.constant 1 : i32
    scf.for %arg6 = %c0_i32 to %0 step %c1_i32  : i32 {
      %c64_i32_1 = arith.constant 64 : i32
      %1 = arith.muli %arg1, %c64_i32_1 : i32
      %2 = arith.addi %1, %arg6 : i32
      %c0 = arith.constant 0 : index
      %3 = arith.index_cast %2 : i32 to index
      %c0_2 = arith.constant 0 : index
      %c0_3 = arith.constant 0 : index
      %4 = vector.load %arg2[%c0, %3, %c0_2, %c0_3] : memref<1x66x66x8xbf16, #tpu.memory_space<vmem>>, vector<1x3x66x8xbf16>
      %5 = vector.shape_cast %4 : vector<1x3x66x8xbf16> to vector<3x66x8xbf16>
      %c0_4 = arith.constant 0 : index
      %c0_5 = arith.constant 0 : index
      %6 = vector.load %arg4[%c0_4, %c0_5] : memref<1x64xf32, #tpu.memory_space<vmem>>, vector<1x64xf32>
      %7 = vector.shape_cast %6 : vector<1x64xf32> to vector<1x64xf32>
      %8 = vector.broadcast %7 : vector<1x64xf32> to vector<64x64xf32>
      %9 = vector.extract_strided_slice %5 {offsets = [0, 0, 0], sizes = [1, 66, 8], strides = [1, 1, 1]} : vector<3x66x8xbf16> to vector<1x66x8xbf16>
      %10 = vector.shape_cast %9 : vector<1x66x8xbf16> to vector<66x8xbf16>
      %11 = vector.extract_strided_slice %10 {offsets = [0, 0], sizes = [64, 8], strides = [1, 1]} : vector<66x8xbf16> to vector<64x8xbf16>
      %c0_6 = arith.constant 0 : index
      %c0_7 = arith.constant 0 : index
      %c0_8 = arith.constant 0 : index
      %12 = vector.load %arg3[%c0_6, %c0_7, %c0_8] : memref<9x8x64xbf16, #tpu.memory_space<vmem>>, vector<1x8x64xbf16>
      %13 = vector.shape_cast %12 : vector<1x8x64xbf16> to vector<8x64xbf16>
      %cst = arith.constant dense<0.000000e+00> : vector<64x64xf32>
      %14 = tpu.matmul %11, %13, %cst {dimension_numbers = #tpu.dot_dimension_numbers<[1], [0], [0], [1], [0, 0, 1, 1], [], []>} : vector<64x8xbf16>, vector<8x64xbf16>, vector<64x64xf32> -> vector<64x64xf32>
      %15 = arith.addf %8, %14 : vector<64x64xf32>
      %16 = vector.extract_strided_slice %10 {offsets = [1, 0], sizes = [64, 8], strides = [1, 1]} : vector<66x8xbf16> to vector<64x8xbf16>
      %c1 = arith.constant 1 : index
      %c0_9 = arith.constant 0 : index
      %c0_10 = arith.constant 0 : index
      %17 = vector.load %arg3[%c1, %c0_9, %c0_10] : memref<9x8x64xbf16, #tpu.memory_space<vmem>>, vector<1x8x64xbf16>
      %18 = vector.shape_cast %17 : vector<1x8x64xbf16> to vector<8x64xbf16>
      %cst_11 = arith.constant dense<0.000000e+00> : vector<64x64xf32>
      %19 = tpu.matmul %16, %18, %cst_11 {dimension_numbers = #tpu.dot_dimension_numbers<[1], [0], [0], [1], [0, 0, 1, 1], [], []>} : vector<64x8xbf16>, vector<8x64xbf16>, vector<64x64xf32> -> vector<64x64xf32>
      %20 = arith.addf %15, %19 : vector<64x64xf32>
      %21 = vector.extract_strided_slice %10 {offsets = [2, 0], sizes = [64, 8], strides = [1, 1]} : vector<66x8xbf16> to vector<64x8xbf16>
      %c2 = arith.constant 2 : index
      %c0_12 = arith.constant 0 : index
      %c0_13 = arith.constant 0 : index
      %22 = vector.load %arg3[%c2, %c0_12, %c0_13] : memref<9x8x64xbf16, #tpu.memory_space<vmem>>, vector<1x8x64xbf16>
      %23 = vector.shape_cast %22 : vector<1x8x64xbf16> to vector<8x64xbf16>
      %cst_14 = arith.constant dense<0.000000e+00> : vector<64x64xf32>
      %24 = tpu.matmul %21, %23, %cst_14 {dimension_numbers = #tpu.dot_dimension_numbers<[1], [0], [0], [1], [0, 0, 1, 1], [], []>} : vector<64x8xbf16>, vector<8x64xbf16>, vector<64x64xf32> -> vector<64x64xf32>
      %25 = arith.addf %20, %24 : vector<64x64xf32>
      %26 = vector.extract_strided_slice %5 {offsets = [1, 0, 0], sizes = [1, 66, 8], strides = [1, 1, 1]} : vector<3x66x8xbf16> to vector<1x66x8xbf16>
      %27 = vector.shape_cast %26 : vector<1x66x8xbf16> to vector<66x8xbf16>
      %28 = vector.extract_strided_slice %27 {offsets = [0, 0], sizes = [64, 8], strides = [1, 1]} : vector<66x8xbf16> to vector<64x8xbf16>
      %c3 = arith.constant 3 : index
      %c0_15 = arith.constant 0 : index
      %c0_16 = arith.constant 0 : index
      %29 = vector.load %arg3[%c3, %c0_15, %c0_16] : memref<9x8x64xbf16, #tpu.memory_space<vmem>>, vector<1x8x64xbf16>
      %30 = vector.shape_cast %29 : vector<1x8x64xbf16> to vector<8x64xbf16>
      %cst_17 = arith.constant dense<0.000000e+00> : vector<64x64xf32>
      %31 = tpu.matmul %28, %30, %cst_17 {dimension_numbers = #tpu.dot_dimension_numbers<[1], [0], [0], [1], [0, 0, 1, 1], [], []>} : vector<64x8xbf16>, vector<8x64xbf16>, vector<64x64xf32> -> vector<64x64xf32>
      %32 = arith.addf %25, %31 : vector<64x64xf32>
      %33 = vector.extract_strided_slice %27 {offsets = [1, 0], sizes = [64, 8], strides = [1, 1]} : vector<66x8xbf16> to vector<64x8xbf16>
      %c4 = arith.constant 4 : index
      %c0_18 = arith.constant 0 : index
      %c0_19 = arith.constant 0 : index
      %34 = vector.load %arg3[%c4, %c0_18, %c0_19] : memref<9x8x64xbf16, #tpu.memory_space<vmem>>, vector<1x8x64xbf16>
      %35 = vector.shape_cast %34 : vector<1x8x64xbf16> to vector<8x64xbf16>
      %cst_20 = arith.constant dense<0.000000e+00> : vector<64x64xf32>
      %36 = tpu.matmul %33, %35, %cst_20 {dimension_numbers = #tpu.dot_dimension_numbers<[1], [0], [0], [1], [0, 0, 1, 1], [], []>} : vector<64x8xbf16>, vector<8x64xbf16>, vector<64x64xf32> -> vector<64x64xf32>
      %37 = arith.addf %32, %36 : vector<64x64xf32>
      %38 = vector.extract_strided_slice %27 {offsets = [2, 0], sizes = [64, 8], strides = [1, 1]} : vector<66x8xbf16> to vector<64x8xbf16>
      %c5 = arith.constant 5 : index
      %c0_21 = arith.constant 0 : index
      %c0_22 = arith.constant 0 : index
      %39 = vector.load %arg3[%c5, %c0_21, %c0_22] : memref<9x8x64xbf16, #tpu.memory_space<vmem>>, vector<1x8x64xbf16>
      %40 = vector.shape_cast %39 : vector<1x8x64xbf16> to vector<8x64xbf16>
      %cst_23 = arith.constant dense<0.000000e+00> : vector<64x64xf32>
      %41 = tpu.matmul %38, %40, %cst_23 {dimension_numbers = #tpu.dot_dimension_numbers<[1], [0], [0], [1], [0, 0, 1, 1], [], []>} : vector<64x8xbf16>, vector<8x64xbf16>, vector<64x64xf32> -> vector<64x64xf32>
      %42 = arith.addf %37, %41 : vector<64x64xf32>
      %43 = vector.extract_strided_slice %5 {offsets = [2, 0, 0], sizes = [1, 66, 8], strides = [1, 1, 1]} : vector<3x66x8xbf16> to vector<1x66x8xbf16>
      %44 = vector.shape_cast %43 : vector<1x66x8xbf16> to vector<66x8xbf16>
      %45 = vector.extract_strided_slice %44 {offsets = [0, 0], sizes = [64, 8], strides = [1, 1]} : vector<66x8xbf16> to vector<64x8xbf16>
      %c6 = arith.constant 6 : index
      %c0_24 = arith.constant 0 : index
      %c0_25 = arith.constant 0 : index
      %46 = vector.load %arg3[%c6, %c0_24, %c0_25] : memref<9x8x64xbf16, #tpu.memory_space<vmem>>, vector<1x8x64xbf16>
      %47 = vector.shape_cast %46 : vector<1x8x64xbf16> to vector<8x64xbf16>
      %cst_26 = arith.constant dense<0.000000e+00> : vector<64x64xf32>
      %48 = tpu.matmul %45, %47, %cst_26 {dimension_numbers = #tpu.dot_dimension_numbers<[1], [0], [0], [1], [0, 0, 1, 1], [], []>} : vector<64x8xbf16>, vector<8x64xbf16>, vector<64x64xf32> -> vector<64x64xf32>
      %49 = arith.addf %42, %48 : vector<64x64xf32>
      %50 = vector.extract_strided_slice %44 {offsets = [1, 0], sizes = [64, 8], strides = [1, 1]} : vector<66x8xbf16> to vector<64x8xbf16>
      %c7 = arith.constant 7 : index
      %c0_27 = arith.constant 0 : index
      %c0_28 = arith.constant 0 : index
      %51 = vector.load %arg3[%c7, %c0_27, %c0_28] : memref<9x8x64xbf16, #tpu.memory_space<vmem>>, vector<1x8x64xbf16>
      %52 = vector.shape_cast %51 : vector<1x8x64xbf16> to vector<8x64xbf16>
      %cst_29 = arith.constant dense<0.000000e+00> : vector<64x64xf32>
      %53 = tpu.matmul %50, %52, %cst_29 {dimension_numbers = #tpu.dot_dimension_numbers<[1], [0], [0], [1], [0, 0, 1, 1], [], []>} : vector<64x8xbf16>, vector<8x64xbf16>, vector<64x64xf32> -> vector<64x64xf32>
      %54 = arith.addf %49, %53 : vector<64x64xf32>
      %55 = vector.extract_strided_slice %44 {offsets = [2, 0], sizes = [64, 8], strides = [1, 1]} : vector<66x8xbf16> to vector<64x8xbf16>
      %c8 = arith.constant 8 : index
      %c0_30 = arith.constant 0 : index
      %c0_31 = arith.constant 0 : index
      %56 = vector.load %arg3[%c8, %c0_30, %c0_31] : memref<9x8x64xbf16, #tpu.memory_space<vmem>>, vector<1x8x64xbf16>
      %57 = vector.shape_cast %56 : vector<1x8x64xbf16> to vector<8x64xbf16>
      %cst_32 = arith.constant dense<0.000000e+00> : vector<64x64xf32>
      %58 = tpu.matmul %55, %57, %cst_32 {dimension_numbers = #tpu.dot_dimension_numbers<[1], [0], [0], [1], [0, 0, 1, 1], [], []>} : vector<64x8xbf16>, vector<8x64xbf16>, vector<64x64xf32> -> vector<64x64xf32>
      %59 = arith.addf %54, %58 : vector<64x64xf32>
      %cst_33 = arith.constant 0.000000e+00 : f32
      %60 = vector.broadcast %cst_33 : f32 to vector<64x64xf32>
      %61 = arith.maximumf %59, %60 : vector<64x64xf32>
      %62 = arith.truncf %61 : vector<64x64xf32> to vector<64x64xbf16>
      %c0_34 = arith.constant 0 : index
      %63 = arith.index_cast %arg6 : i32 to index
      %c0_35 = arith.constant 0 : index
      %c0_36 = arith.constant 0 : index
      %64 = vector.load %arg5[%c0_34, %63, %c0_35, %c0_36] : memref<1x64x64x64xbf16, #tpu.memory_space<vmem>>, vector<1x1x64x64xbf16>
      %65 = vector.shape_cast %64 : vector<1x1x64x64xbf16> to vector<64x64xbf16>
      %66 = vector.shape_cast %62 : vector<64x64xbf16> to vector<1x1x64x64xbf16>
      tpu.vector_store %arg5[%c0_34, %63, %c0_35, %c0_36], %66 {strides = array<i32>} : memref<1x64x64x64xbf16, #tpu.memory_space<vmem>>, vector<1x1x64x64xbf16>,
    }
    %c64_i32_0 = arith.constant 64 : i32
    return
  }
  func.func @transform_0(%arg0: i32, %arg1: i32) -> (i32, i32, i32, i32) {
    %c0_i32 = arith.constant 0 : i32
    %c0_i32_0 = arith.constant 0 : i32
    %c0_i32_1 = arith.constant 0 : i32
    %c0_i32_2 = arith.constant 0 : i32
    return %arg0, %c0_i32, %c0_i32_0, %c0_i32_1 : i32, i32, i32, i32
  }
  func.func @transform_1(%arg0: i32, %arg1: i32) -> (i32, i32, i32) {
    %c0_i32 = arith.constant 0 : i32
    %c0_i32_0 = arith.constant 0 : i32
    %c0_i32_1 = arith.constant 0 : i32
    %c0_i32_2 = arith.constant 0 : i32
    return %c0_i32, %c0_i32_0, %c0_i32_1 : i32, i32, i32
  }
  func.func @transform_2(%arg0: i32, %arg1: i32) -> (i32, i32) {
    %c0_i32 = arith.constant 0 : i32
    %c0_i32_0 = arith.constant 0 : i32
    %c0_i32_1 = arith.constant 0 : i32
    return %c0_i32, %c0_i32_0 : i32, i32
  }
  func.func @transform_3(%arg0: i32, %arg1: i32) -> (i32, i32, i32, i32) {
    %c0_i32 = arith.constant 0 : i32
    %c0_i32_0 = arith.constant 0 : i32
    %c0_i32_1 = arith.constant 0 : i32
    return %arg0, %arg1, %c0_i32, %c0_i32_0 : i32, i32, i32, i32
  }
}

</mosaic_0001>

<llo_original>
// kernel: conv3x3_relu.1
$region0: #{conv3x3_relu.1}
  #allocation0 [shape = 'u32[]', space=smem, size = 0x4, offset = 0x4, fixed_abs, tag = 'smem constant byte address 0x4 - core index']
  #allocation1 [shape = 'u32[144,128]{1,0:T(1,128)}', space=vmem, size = 0x12000, scoped, tag = 'internal scratch']
  %s0 = inlined_call_operand.vmem [shape: bf16[2,66,66,8], index: 0, kind: input, shape index: {}]
  %s1 = inlined_call_operand.vmem [shape: bf16[9,8,64], index: 1, kind: input, shape index: {}]
  %s2 = inlined_call_operand.vmem [shape: f32[1,64], index: 2, kind: input, shape index: {}]
  %s3 = inlined_call_operand.hbm [shape: bf16[2,64,64,64], index: 3, kind: output, shape index: {}]
  %s4 = sld [smem:[#allocation0]]
  $region52: #{conv3x3_relu.1} parent=0
    _
  %s6 = ssub.s32 1, %s4
  %s7 = scalar_select 0, %s6, %s4
  $region1: #{conv3x3_relu.1} parent=0
    #allocation2 [shape = 'u8[2097152]{0}', space=vmem, size = 0x200000, scoped, tag = 'output window, operand 0']
    #allocation3 [shape = 's32[2]{0}', space=sflag, size = 0x8, scoped, tag = 'scoped memory for conv3x3_relu.1']
    %8 = vsyncpa [#allocation3], 0
    %s9 = scalar_lea.sflag [#allocation3], 1
    %10 = vsyncpa %s9, 0
    loop: start=0, step=1, limit=4
    $region2: #{conv3x3_relu.1} parent=1 // loop_pre_header
      _
    $region3: #{conv3x3_relu.1} parent=1 // loop_header
      %s12 = sphi 0, %s16
      %p13 = scmp.ge.s32.totalorder %s12, 4
      %s19 = sphi 0, %s31
      %s20 = sphi 0, %s27
      %s21 = sphi 0, %s19
      %s22 = sphi 0, %s20
      %s23 = sphi 0, %s21
      %s24 = sphi 0, %s22
      %s34 = sphi 0, %s36
      %s37 = sphi 0, %s34
      %s38 = sphi 0, %s37
      %s54 = sphi 0, %s38
      %s58 = sphi 0, %s58
      %s60 = sphi 0, %s58
      %s61 = sphi 0, %s60
      %s75 = sphi 0, %s61
      %s79 = sphi 0, %s79
      %s81 = sphi 0, %s79
      %s82 = sphi 0, %s81
      %s96 = sphi 0, %s82
      %s104 = sphi 0, %s106
      %s107 = sphi 0, %s104
      %s108 = sphi 0, %s107
      %s124 = sphi 0, %s108
    $region4: #{conv3x3_relu.1} parent=1 // loop_header_branch
      %15 = sbr.rel (%p13) target = $region8
    $region5: #{conv3x3_relu.1} parent=1 // loop_body
      %s17 = ssub.s32 %s12, 1
      %s18 = ssub.s32 %s12, 2
      %s25 = sadd.s32 1, %s20
      %p26 = scmp.ge.s32.totalorder %s25, 1
      %s27 = scalar_select %p26, 0, %s25
      %s28 = sadd.s32 1, %s19
      %s29 = scalar_select %p26, %s28, %s19
      %p30 = scmp.ge.s32.totalorder %s29, 2
      %s31 = scalar_select %p30, 0, %s29
      %s32 = ssub.s32 %s19, %s31
      %p33 = scmp.eq.s32.totalorder %s32, 0
      %s35 = sadd.s32 %s34, 1
      %s36 = scalar_select %p33, %s34, %s35
      %p39 = pneg %p33
      %p40 = scmp.eq.s32.totalorder %s12, 1
      %p41 = por %p39, %p40
      %p42 = scmp.ne.s32.totalorder %s34, %s37
      %p43 = scmp.eq.s32.totalorder %s12, 0
      %p44 = por %p42, %p43
      %p45 = scmp.ne.s32.totalorder %s34, %s37
      %p46 = scmp.eq.s32.totalorder %s17, 1
      %p47 = por %p45, %p46
      %p48 = scmp.ne.s32.totalorder %s37, %s38
      %p49 = scmp.eq.s32.totalorder %s17, 0
      %p50 = por %p48, %p49
      %p51 = scmp.ne.s32.totalorder %s37, %s38
      %p52 = scmp.eq.s32.totalorder %s18, 1
      %p53 = por %p51, %p52
      %p55 = scmp.ne.s32.totalorder %s38, %s54
      %p56 = scmp.eq.s32.totalorder %s18, 0
      %p57 = por %p55, %p56
      %s59 = sadd.s32 %s58, 1
      %p62 = scmp.eq.s32.totalorder %s12, 1
      %p63 = scmp.ne.s32.totalorder %s58, %s60
      %p64 = scmp.eq.s32.totalorder %s12, 0
      %p65 = por %p63, %p64
      %p66 = scmp.ne.s32.totalorder %s58, %s60
      %p67 = scmp.eq.s32.totalorder %s17, 1
      %p68 = por %p66, %p67
      %p69 = scmp.ne.s32.totalorder %s60, %s61
      %p70 = scmp.eq.s32.totalorder %s17, 0
      %p71 = por %p69, %p70
      %p72 = scmp.ne.s32.totalorder %s60, %s61
      %p73 = scmp.eq.s32.totalorder %s18, 1
      %p74 = por %p72, %p73
      %p76 = scmp.ne.s32.totalorder %s61, %s75
      %p77 = scmp.eq.s32.totalorder %s18, 0
      %p78 = por %p76, %p77
      %s80 = sadd.s32 %s79, 1
      %p83 = scmp.eq.s32.totalorder %s12, 1
      %p84 = scmp.ne.s32.totalorder %s79, %s81
      %p85 = scmp.eq.s32.totalorder %s12, 0
      %p86 = por %p84, %p85
      %p87 = scmp.ne.s32.totalorder %s79, %s81
      %p88 = scmp.eq.s32.totalorder %s17, 1
      %p89 = por %p87, %p88
      %p90 = scmp.ne.s32.totalorder %s81, %s82
      %p91 = scmp.eq.s32.totalorder %s17, 0
      %p92 = por %p90, %p91
      %p93 = scmp.ne.s32.totalorder %s81, %s82
      %p94 = scmp.eq.s32.totalorder %s18, 1
      %p95 = por %p93, %p94
      %p97 = scmp.ne.s32.totalorder %s82, %s96
      %p98 = scmp.eq.s32.totalorder %s18, 0
      %p99 = por %p97, %p98
      %s100 = ssub.s32 %s19, %s31
      %s101 = ssub.s32 %s20, %s27
      %s102 = sor.u32 %s100, %s101
      %p103 = scmp.eq.s32.totalorder %s102, 0
      %s105 = sadd.s32 %s104, 1
      %s106 = scalar_select %p103, %s104, %s105
      %p109 = pneg %p103
      %p110 = scmp.eq.s32.totalorder %s12, 1
      %p111 = por %p109, %p110
      %p112 = scmp.ne.s32.totalorder %s104, %s107
      %p113 = scmp.eq.s32.totalorder %s12, 0
      %p114 = por %p112, %p113
      %p115 = scmp.ne.s32.totalorder %s104, %s107
      %p116 = scmp.eq.s32.totalorder %s17, 1
      %p117 = por %p115, %p116
      %p118 = scmp.ne.s32.totalorder %s107, %s108
      %p119 = scmp.eq.s32.totalorder %s17, 0
      %p120 = por %p118, %p119
      %p121 = scmp.ne.s32.totalorder %s107, %s108
      %p122 = scmp.eq.s32.totalorder %s18, 1
      %p123 = por %p121, %p122
      %p125 = scmp.ne.s32.totalorder %s108, %s124
      %p126 = scmp.eq.s32.totalorder %s18, 0
      %p127 = por %p125, %p126
      %p128 = scmp.le.s32.totalorder 1, %s12
      %p129 = scmp.lt.s32.totalorder %s12, 3
      %p130 = pnand %p128, %p129
      %p131 = pneg %p130
      // Predicated region
      $region9: #{conv3x3_relu.1} parent=5 // pred_check
        _
      $region10: #{conv3x3_relu.1} parent=5 // pred_check_branch
        %133 = sbr.rel (%p130) target = $region12
      $region11: #{conv3x3_relu.1} parent=5 // pred_region
        %s134 = ssub.s32 %s12, 1
        // Predicated region
        $region13: #{conv3x3_relu.1} parent=11 // pred_check
          %p135 = pneg %p71
        $region14: #{conv3x3_relu.1} parent=11 // pred_check_branch
          %137 = sbr.rel (%p135) target = $region16
        $region15: #{conv3x3_relu.1} parent=11 // pred_region
          _
        $region16: #{conv3x3_relu.1} parent=11 // pred_fallthru
          _
        // Predicated region
        $region17: #{conv3x3_relu.1} parent=11 // pred_check
          %p138 = pneg %p92
        $region18: #{conv3x3_relu.1} parent=11 // pred_check_branch
          %140 = sbr.rel (%p138) target = $region20
        $region19: #{conv3x3_relu.1} parent=11 // pred_region
          _
        $region20: #{conv3x3_relu.1} parent=11 // pred_fallthru
          _
      $region12: #{conv3x3_relu.1} parent=5 // pred_fallthru
        _
      %p141 = scmp.lt.s32.totalorder %s12, 2
      // Predicated region
      $region21: #{conv3x3_relu.1} parent=5 // pred_check
        %p142 = pneg %p141
      $region22: #{conv3x3_relu.1} parent=5 // pred_check_branch
        %144 = sbr.rel (%p142) target = $region24
      $region23: #{conv3x3_relu.1} parent=5 // pred_region
        // Predicated region
        $region25: #{conv3x3_relu.1} parent=23 // pred_check
          %p145 = pneg %p44
        $region26: #{conv3x3_relu.1} parent=23 // pred_check_branch
          %147 = sbr.rel (%p145) target = $region28
        $region27: #{conv3x3_relu.1} parent=23 // pred_region
          %p148 = scmp.lt.s32.totalorder %s19, 1
          %s149 = scalar_select %p148, %s19, 1
          %s150 = smul.addr %s149, 594
          %s151 = smul.addr %s150, 4
          %s152 = scalar_lea.vmem %s0, %s151
        $region28: #{conv3x3_relu.1} parent=23 // pred_fallthru
          _
      $region24: #{conv3x3_relu.1} parent=5 // pred_fallthru
        _
      %p153 = scmp.le.s32.totalorder 1, %s12
      %p154 = scmp.lt.s32.totalorder %s12, 3
      %p155 = pnand %p153, %p154
      %p156 = pneg %p155
      // Predicated region
      $region29: #{conv3x3_relu.1} parent=5 // pred_check
        _
      $region30: #{conv3x3_relu.1} parent=5 // pred_check_branch
        %158 = sbr.rel (%p155) target = $region32
      $region31: #{conv3x3_relu.1} parent=5 // pred_region
        %s159 = ssub.s32 %s12, 1
        %p160 = scmp.lt.s32.totalorder %s21, 1
        %s161 = scalar_select %p160, %s21, 1
        %s162 = smul.addr %s161, 594
        %s163 = smul.addr %s162, 4
        %s164 = scalar_lea.vmem %s0, %s163
        %p165 = pneg %p50
        %p166 = pneg %p47
        %p167 = pneg %p71
        %p168 = pneg %p68
        %p169 = pneg %p92
        %p170 = pneg %p89
        %p171 = pneg %p120
        %p172 = pneg %p117
        %s173 = sand.u32 %s107, 1
        %s174 = scalar_lea.sflag [#allocation3], %s173
        %s175 = sand.u32 %s107, 1
        %s176 = smul.addr %s175, 2048
        %s177 = scalar_lea.vmem [#allocation2], %s176
        %p178 = scmp.lt.s32.totalorder %s21, 1
        %s179 = scalar_select %p178, %s21, 1
        %s180 = smul.addr %s179, 594
        %s181 = smul.addr %s180, 4
        %s182 = scalar_lea.vmem %s0, %s181
        %s183 = smul.u32 64, %s22
        loop: start=0, step=1, limit=64
        $region33: #{conv3x3_relu.1} parent=31 // loop_pre_header
          _
        $region34: #{conv3x3_relu.1} parent=31 // loop_header
          %s186 = sphi 0, %s190
          %p187 = scmp.ge.s32.totalorder %s186, 64
        $region35: #{conv3x3_relu.1} parent=31 // loop_header_branch
          %189 = sbr.rel (%p187) target = $region39
        $region36: #{conv3x3_relu.1} parent=31 // loop_body
          %s191 = smul.u32 %s22, 64
          %s192 = sadd.s32 %s191, %s186
          %s193 = smul.u32 %s192, 9
          %s194 = smul.addr %s193, 4
          %s195 = scalar_lea.vmem %s182, %s194
          %v196 = vld [vmem:[%s195] sm:$0xf]
          %v197 = vld [vmem:[%s195 + $0x4] sm:$0xf]
          %v198 = vld [vmem:[%s195 + $0x8] sm:$0xf]
          %v199 = vld [vmem:[%s195 + $0xc] sm:$0xf]
          %v200 = vld [vmem:[%s195 + $0x10] sm:$0xf]
          %v201 = vld [vmem:[%s195 + $0x14] sm:$0xf]
          %v202 = vld [vmem:[%s195 + $0x18] sm:$0xf]
          %v203 = vld [vmem:[%s195 + $0x1c] sm:$0xf]
          %v204 = vld [vmem:[%s195 + $0x20] sm:$0x1]
          %v205 = vld [vmem:[%s195 + $0x24] sm:$0xf]
          %v206 = vld [vmem:[%s195 + $0x28] sm:$0xf]
          %v207 = vld [vmem:[%s195 + $0x2c] sm:$0xf]
          %v208 = vld [vmem:[%s195 + $0x30] sm:$0xf]
          %v209 = vld [vmem:[%s195 + $0x34] sm:$0xf]
          %v210 = vld [vmem:[%s195 + $0x38] sm:$0xf]
          %v211 = vld [vmem:[%s195 + $0x3c] sm:$0xf]
          %v212 = vld [vmem:[%s195 + $0x40] sm:$0xf]
          %v213 = vld [vmem:[%s195 + $0x44] sm:$0x1]
          %v214 = vld [vmem:[%s195 + $0x48] sm:$0xf]
          %v215 = vld [vmem:[%s195 + $0x4c] sm:$0xf]
          %v216 = vld [vmem:[%s195 + $0x50] sm:$0xf]
          %v217 = vld [vmem:[%s195 + $0x54] sm:$0xf]
          %v218 = vld [vmem:[%s195 + $0x58] sm:$0xf]
          %v219 = vld [vmem:[%s195 + $0x5c] sm:$0xf]
          %v220 = vld [vmem:[%s195 + $0x60] sm:$0xf]
          %v221 = vld [vmem:[%s195 + $0x64] sm:$0xf]
          %v222 = vld [vmem:[%s195 + $0x68] sm:$0x1]
          %v223 = vld [vmem:[%s2] sm:$0x1]
          %v225 = vlaneseq
          %v226 = vshrl.u32 %v225, 7
          %v227 = vsub.s32 0, %v226
          %v228 = vrot.slane %v223, %v227
          %v230 = vld [vmem:[%s1] sm:$0xf]
          %v239 = vunpack.c.l.b16 %v196
          %v240 = vunpack.c.l.b16 %v197
          %v241 = vunpack.c.l.b16 %v198
          %v242 = vunpack.c.l.b16 %v199
          %v243 = vunpack.c.l.b16 %v200
          %v244 = vunpack.c.l.b16 %v201
          %v245 = vunpack.c.l.b16 %v202
          %v246 = vunpack.c.l.b16 %v203
          %v247 = vpack.c.b16 %v240, %v239
          %v248 = vpack.c.b16 %v242, %v241
          %v249 = vpack.c.b16 %v244, %v243
          %v250 = vpack.c.b16 %v246, %v245
          %vm251 = vcmask 64512
          %v253 = vsel %vm251, %v247, 0
          %v256 = vsel %vm251, %v248, 0
          %v259 = vsel %vm251, %v249, 0
          %v262 = vsel %vm251, %v250, 0
          %vm264 = vcmask 1043456
          %v266 = vsel %vm264, %v230, 0
          %268 = vmatprep.subr.bf16.mxu0 0
          %269 = vmatpush1.bf16.msra.mxu0 %v266
          %270 = vmatprep.subr.bf16.mxu0 0
          %271 = vmatpush1.bf16.msra.mxu0 0
          %272 = vmatprep.subr.bf16.mxu0 0
          %273 = vmatpush1.bf16.msra.mxu0 0
          %274 = vmatprep.subr.bf16.mxu0 0
          %275 = vmatpush1.bf16.msra.mxu0 0
          %276 = vmatprep.subr.bf16.mxu0 0
          %277 = vmatpush1.bf16.msra.mxu0 0
          %278 = vmatprep.subr.bf16.mxu0 0
          %279 = vmatpush1.bf16.msra.mxu0 0
          %280 = vmatprep.subr.bf16.mxu0 0
          %281 = vmatpush1.bf16.msra.mxu0 0
          %282 = vmatprep.subr.bf16.mxu0 0
          %283 = vmatpush1.bf16.msra.mxu0 0
          %284 = vmatprep.subr.bf16.mxu0 0
          %285 = vmatpush1.bf16.msra.mxu0 0
          %286 = vmatprep.subr.bf16.mxu0 0
          %287 = vmatpush1.bf16.msra.mxu0 0
          %288 = vmatprep.subr.bf16.mxu0 0
          %289 = vmatpush1.bf16.msra.mxu0 0
          %290 = vmatprep.subr.bf16.mxu0 0
          %291 = vmatpush1.bf16.msra.mxu0 0
          %292 = vmatprep.subr.bf16.mxu0 0
          %293 = vmatpush1.bf16.msra.mxu0 0
          %294 = vmatprep.subr.bf16.mxu0 0
          %295 = vmatpush1.bf16.msra.mxu0 0
          %296 = vmatprep.subr.bf16.mxu0 0
          %297 = vmatpush1.bf16.msra.mxu0 0
          %298 = vmatprep.subr.bf16.mxu0 0
          %299 = vmatpush1.bf16.msra.mxu0 0
          %300 = vmatprep.mubr.bf16.mxu0 0
          %301 = vmatmul.mubr.bf16.gmra.mrb[0].mxu0 %v253
          %v302 = vpop.f32.mrb[0].mxu0
          %v303 = vadd.f32 0.0, %v302
          %v304 = vpop.f32.mrb[0].mxu0
          %v305 = vpop.f32.mrb[0].mxu0
          %v306 = vadd.f32 0.0, %v305
          %v307 = vpop.f32.mrb[0].mxu0
          %308 = vmatprep.mubr.bf16.mxu0 0
          %309 = vmatmul.mubr.bf16.gmra.mrb[0].mxu0 %v256
          %v310 = vpop.f32.mrb[0].mxu0
          %v311 = vadd.f32 0.0, %v310
          %v312 = vpop.f32.mrb[0].mxu0
          %v313 = vpop.f32.mrb[0].mxu0
          %v314 = vadd.f32 0.0, %v313
          %v315 = vpop.f32.mrb[0].mxu0
          %316 = vmatprep.mubr.bf16.mxu0 0
          %317 = vmatmul.mubr.bf16.gmra.mrb[0].mxu0 %v259
          %v318 = vpop.f32.mrb[0].mxu0
          %v319 = vadd.f32 0.0, %v318
          %v320 = vpop.f32.mrb[0].mxu0
          %v321 = vpop.f32.mrb[0].mxu0
          %v322 = vadd.f32 0.0, %v321
          %v323 = vpop.f32.mrb[0].mxu0
          %324 = vmatprep.mubr.bf16.mxu0 0
          %325 = vmatmul.mubr.bf16.gmra.mrb[0].mxu0 %v262
          %v326 = vpop.f32.mrb[0].mxu0
          %v327 = vadd.f32 0.0, %v326
          %v328 = vpop.f32.mrb[0].mxu0
          %v329 = vpop.f32.mrb[0].mxu0
          %v330 = vadd.f32 0.0, %v329
          %v331 = vpop.f32.mrb[0].mxu0
          %332 = vdwg.mxu0
          %v333 = vadd.f32 %v228, %v303
          %v334 = vadd.f32 %v228, %v306
          %v335 = vadd.f32 %v228, %v311
          %v336 = vadd.f32 %v228, %v314
          %v337 = vadd.f32 %v228, %v319
          %v338 = vadd.f32 %v228, %v322
          %v339 = vadd.f32 %v228, %v327
          %v340 = vadd.f32 %v228, %v330
          %s341 = scalar_lea.vmem %s1, 4
          %v342 = vld [vmem:[%s341] sm:$0xf]
          %v344 = vunpack.c.l.b16 %v204
          %v345 = vpack.c.b16 %v344, %v344
          %vm346 = vsmask.f32 7424
          %v347 = vshrl.u32 %v247, 16
          %v349 = vshll.u32 %v247, 16
          %v351 = vrot.slane %v349, 1
          %v352 = vor.u32 %v347, %v351
          %v353 = vshll.u32 %v248, 16
          %v355 = vrot.slane %v353, 1
          %v356 = vsel %vm346, %v352, %v355
          %v357 = vshrl.u32 %v248, 16
          %v359 = vor.u32 %v357, %v355
          %v360 = vshll.u32 %v249, 16
          %v362 = vrot.slane %v360, 1
          %v363 = vsel %vm346, %v359, %v362
          %v364 = vshrl.u32 %v249, 16
          %v366 = vor.u32 %v364, %v362
          %v367 = vshll.u32 %v250, 16
          %v369 = vrot.slane %v367, 1
          %v370 = vsel %vm346, %v366, %v369
          %v371 = vshrl.u32 %v250, 16
          %v373 = vor.u32 %v371, %v369
          %v375 = vshll.u32 %v345, 16
          %v377 = vrot.slane %v375, 1
          %v378 = vsel %vm346, %v373, %v377
          %v380 = vsel %vm251, %v356, 0
          %v383 = vsel %vm251, %v363, 0
          %v386 = vsel %vm251, %v370, 0
          %v389 = vsel %vm251, %v378, 0
          %v392 = vsel %vm264, %v342, 0
          %394 = vmatprep.subr.bf16.mxu0 0
          %395 = vmatpush1.bf16.msra.mxu0 %v392
          %396 = vmatprep.subr.bf16.mxu0 0
          %397 = vmatpush1.bf16.msra.mxu0 0
          %398 = vmatprep.subr.bf16.mxu0 0
          %399 = vmatpush1.bf16.msra.mxu0 0
          %400 = vmatprep.subr.bf16.mxu0 0
          %401 = vmatpush1.bf16.msra.mxu0 0
          %402 = vmatprep.subr.bf16.mxu0 0
          %403 = vmatpush1.bf16.msra.mxu0 0
          %404 = vmatprep.subr.bf16.mxu0 0
          %405 = vmatpush1.bf16.msra.mxu0 0
          %406 = vmatprep.subr.bf16.mxu0 0
          %407 = vmatpush1.bf16.msra.mxu0 0
          %408 = vmatprep.subr.bf16.mxu0 0
          %409 = vmatpush1.bf16.msra.mxu0 0
          %410 = vmatprep.subr.bf16.mxu0 0
          %411 = vmatpush1.bf16.msra.mxu0 0
          %412 = vmatprep.subr.bf16.mxu0 0
          %413 = vmatpush1.bf16.msra.mxu0 0
          %414 = vmatprep.subr.bf16.mxu0 0
          %415 = vmatpush1.bf16.msra.mxu0 0
          %416 = vmatprep.subr.bf16.mxu0 0
          %417 = vmatpush1.bf16.msra.mxu0 0
          %418 = vmatprep.subr.bf16.mxu0 0
          %419 = vmatpush1.bf16.msra.mxu0 0
          %420 = vmatprep.subr.bf16.mxu0 0
          %421 = vmatpush1.bf16.msra.mxu0 0
          %422 = vmatprep.subr.bf16.mxu0 0
          %423 = vmatpush1.bf16.msra.mxu0 0
          %424 = vmatprep.subr.bf16.mxu0 0
          %425 = vmatpush1.bf16.msra.mxu0 0
          %426 = vmatprep.mubr.bf16.mxu0 0
          %427 = vmatmul.mubr.bf16.gmra.mrb[0].mxu0 %v380
          %v428 = vpop.f32.mrb[0].mxu0
          %v429 = vadd.f32 0.0, %v428
          %v430 = vpop.f32.mrb[0].mxu0
          %v431 = vpop.f32.mrb[0].mxu0
          %v432 = vadd.f32 0.0, %v431
          %v433 = vpop.f32.mrb[0].mxu0
          %434 = vmatprep.mubr.bf16.mxu0 0
          %435 = vmatmul.mubr.bf16.gmra.mrb[0].mxu0 %v383
          %v436 = vpop.f32.mrb[0].mxu0
          %v437 = vadd.f32 0.0, %v436
          %v438 = vpop.f32.mrb[0].mxu0
          %v439 = vpop.f32.mrb[0].mxu0
          %v440 = vadd.f32 0.0, %v439
          %v441 = vpop.f32.mrb[0].mxu0
          %442 = vmatprep.mubr.bf16.mxu0 0
          %443 = vmatmul.mubr.bf16.gmra.mrb[0].mxu0 %v386
          %v444 = vpop.f32.mrb[0].mxu0
          %v445 = vadd.f32 0.0, %v444
          %v446 = vpop.f32.mrb[0].mxu0
          %v447 = vpop.f32.mrb[0].mxu0
          %v448 = vadd.f32 0.0, %v447
          %v449 = vpop.f32.mrb[0].mxu0
          %450 = vmatprep.mubr.bf16.mxu0 0
          %451 = vmatmul.mubr.bf16.gmra.mrb[0].mxu0 %v389
          %v452 = vpop.f32.mrb[0].mxu0
          %v453 = vadd.f32 0.0, %v452
          %v454 = vpop.f32.mrb[0].mxu0
          %v455 = vpop.f32.mrb[0].mxu0
          %v456 = vadd.f32 0.0, %v455
          %v457 = vpop.f32.mrb[0].mxu0
          %458 = vdwg.mxu0
          %v459 = vadd.f32 %v333, %v429
          %v460 = vadd.f32 %v334, %v432
          %v461 = vadd.f32 %v335, %v437
          %v462 = vadd.f32 %v336, %v440
          %v463 = vadd.f32 %v337, %v445
          %v464 = vadd.f32 %v338, %v448
          %v465 = vadd.f32 %v339, %v453
          %v466 = vadd.f32 %v340, %v456
          %s467 = scalar_lea.vmem %s1, 8
          %v468 = vld [vmem:[%s467] sm:$0xf]
          %vm469 = vcmask 1046528
          %v470 = vrot.slane %v247, 1
          %v471 = vrot.slane %v248, 1
          %v472 = vsel %vm469, %v470, %v471
          %v473 = vrot.slane %v249, 1
          %v474 = vsel %vm469, %v471, %v473
          %v475 = vrot.slane %v250, 1
          %v476 = vsel %vm469, %v473, %v475
          %v477 = vrot.slane %v345, 1
          %v478 = vsel %vm469, %v475, %v477
          %v480 = vsel %vm251, %v472, 0
          %v483 = vsel %vm251, %v474, 0
          %v486 = vsel %vm251, %v476, 0
          %v489 = vsel %vm251, %v478, 0
          %v492 = vsel %vm264, %v468, 0
          %494 = vmatprep.subr.bf16.mxu0 0
          %495 = vmatpush1.bf16.msra.mxu0 %v492
          %496 = vmatprep.subr.bf16.mxu0 0
          %497 = vmatpush1.bf16.msra.mxu0 0
          %498 = vmatprep.subr.bf16.mxu0 0
          %499 = vmatpush1.bf16.msra.mxu0 0
          %500 = vmatprep.subr.bf16.mxu0 0
          %501 = vmatpush1.bf16.msra.mxu0 0
          %502 = vmatprep.subr.bf16.mxu0 0
          %503 = vmatpush1.bf16.msra.mxu0 0
          %504 = vmatprep.subr.bf16.mxu0 0
          %505 = vmatpush1.bf16.msra.mxu0 0
          %506 = vmatprep.subr.bf16.mxu0 0
          %507 = vmatpush1.bf16.msra.mxu0 0
          %508 = vmatprep.subr.bf16.mxu0 0
          %509 = vmatpush1.bf16.msra.mxu0 0
          %510 = vmatprep.subr.bf16.mxu0 0
          %511 = vmatpush1.bf16.msra.mxu0 0
          %512 = vmatprep.subr.bf16.mxu0 0
          %513 = vmatpush1.bf16.msra.mxu0 0
          %514 = vmatprep.subr.bf16.mxu0 0
          %515 = vmatpush1.bf16.msra.mxu0 0
          %516 = vmatprep.subr.bf16.mxu0 0
          %517 = vmatpush1.bf16.msra.mxu0 0
          %518 = vmatprep.subr.bf16.mxu0 0
          %519 = vmatpush1.bf16.msra.mxu0 0
          %520 = vmatprep.subr.bf16.mxu0 0
          %521 = vmatpush1.bf16.msra.mxu0 0
          %522 = vmatprep.subr.bf16.mxu0 0
          %523 = vmatpush1.bf16.msra.mxu0 0
          %524 = vmatprep.subr.bf16.mxu0 0
          %525 = vmatpush1.bf16.msra.mxu0 0
          %526 = vmatprep.mubr.bf16.mxu0 0
          %527 = vmatmul.mubr.bf16.gmra.mrb[0].mxu0 %v480
          %v528 = vpop.f32.mrb[0].mxu0
          %v529 = vadd.f32 0.0, %v528
          %v530 = vpop.f32.mrb[0].mxu0
          %v531 = vpop.f32.mrb[0].mxu0
          %v532 = vadd.f32 0.0, %v531
          %v533 = vpop.f32.mrb[0].mxu0
          %534 = vmatprep.mubr.bf16.mxu0 0
          %535 = vmatmul.mubr.bf16.gmra.mrb[0].mxu0 %v483
          %v536 = vpop.f32.mrb[0].mxu0
          %v537 = vadd.f32 0.0, %v536
          %v538 = vpop.f32.mrb[0].mxu0
          %v539 = vpop.f32.mrb[0].mxu0
          %v540 = vadd.f32 0.0, %v539
          %v541 = vpop.f32.mrb[0].mxu0
          %542 = vmatprep.mubr.bf16.mxu0 0
          %543 = vmatmul.mubr.bf16.gmra.mrb[0].mxu0 %v486
          %v544 = vpop.f32.mrb[0].mxu0
          %v545 = vadd.f32 0.0, %v544
          %v546 = vpop.f32.mrb[0].mxu0
          %v547 = vpop.f32.mrb[0].mxu0
          %v548 = vadd.f32 0.0, %v547
          %v549 = vpop.f32.mrb[0].mxu0
          %550 = vmatprep.mubr.bf16.mxu0 0
          %551 = vmatmul.mubr.bf16.gmra.mrb[0].mxu0 %v489
          %v552 = vpop.f32.mrb[0].mxu0
          %v553 = vadd.f32 0.0, %v552
          %v554 = vpop.f32.mrb[0].mxu0
          %v555 = vpop.f32.mrb[0].mxu0
          %v556 = vadd.f32 0.0, %v555
          %v557 = vpop.f32.mrb[0].mxu0
          %558 = vdwg.mxu0
          %v559 = vadd.f32 %v459, %v529
          %v560 = vadd.f32 %v460, %v532
          %v561 = vadd.f32 %v461, %v537
          %v562 = vadd.f32 %v462, %v540
          %v563 = vadd.f32 %v463, %v545
          %v564 = vadd.f32 %v464, %v548
          %v565 = vadd.f32 %v465, %v553
          %v566 = vadd.f32 %v466, %v556
          %s567 = scalar_lea.vmem %s1, 12
          %v568 = vld [vmem:[%s567] sm:$0xf]
          %v577 = vunpack.c.l.b16 %v205
          %v578 = vunpack.c.l.b16 %v206
          %v579 = vunpack.c.l.b16 %v207
          %v580 = vunpack.c.l.b16 %v208
          %v581 = vunpack.c.l.b16 %v209
          %v582 = vunpack.c.l.b16 %v210
          %v583 = vunpack.c.l.b16 %v211
          %v584 = vunpack.c.l.b16 %v212
          %v585 = vpack.c.b16 %v578, %v577
          %v586 = vpack.c.b16 %v580, %v579
          %v587 = vpack.c.b16 %v582, %v581
          %v588 = vpack.c.b16 %v584, %v583
          %v590 = vsel %vm251, %v585, 0
          %v593 = vsel %vm251, %v586, 0
          %v596 = vsel %vm251, %v587, 0
          %v599 = vsel %vm251, %v588, 0
          %v602 = vsel %vm264, %v568, 0
          %604 = vmatprep.subr.bf16.mxu0 0
          %605 = vmatpush1.bf16.msra.mxu0 %v602
          %606 = vmatprep.subr.bf16.mxu0 0
          %607 = vmatpush1.bf16.msra.mxu0 0
          %608 = vmatprep.subr.bf16.mxu0 0
          %609 = vmatpush1.bf16.msra.mxu0 0
          %610 = vmatprep.subr.bf16.mxu0 0
          %611 = vmatpush1.bf16.msra.mxu0 0
          %612 = vmatprep.subr.bf16.mxu0 0
          %613 = vmatpush1.bf16.msra.mxu0 0
          %614 = vmatprep.subr.bf16.mxu0 0
          %615 = vmatpush1.bf16.msra.mxu0 0
          %616 = vmatprep.subr.bf16.mxu0 0
          %617 = vmatpush1.bf16.msra.mxu0 0
          %618 = vmatprep.subr.bf16.mxu0 0
          %619 = vmatpush1.bf16.msra.mxu0 0
          %620 = vmatprep.subr.bf16.mxu0 0
          %621 = vmatpush1.bf16.msra.mxu0 0
          %622 = vmatprep.subr.bf16.mxu0 0
          %623 = vmatpush1.bf16.msra.mxu0 0
          %624 = vmatprep.subr.bf16.mxu0 0
          %625 = vmatpush1.bf16.msra.mxu0 0
          %626 = vmatprep.subr.bf16.mxu0 0
          %627 = vmatpush1.bf16.msra.mxu0 0
          %628 = vmatprep.subr.bf16.mxu0 0
          %629 = vmatpush1.bf16.msra.mxu0 0
          %630 = vmatprep.subr.bf16.mxu0 0
          %631 = vmatpush1.bf16.msra.mxu0 0
          %632 = vmatprep.subr.bf16.mxu0 0
          %633 = vmatpush1.bf16.msra.mxu0 0
          %634 = vmatprep.subr.bf16.mxu0 0
          %635 = vmatpush1.bf16.msra.mxu0 0
          %636 = vmatprep.mubr.bf16.mxu0 0
          %637 = vmatmul.mubr.bf16.gmra.mrb[0].mxu0 %v590
          %v638 = vpop.f32.mrb[0].mxu0
          %v639 = vadd.f32 0.0, %v638
          %v640 = vpop.f32.mrb[0].mxu0
          %v641 = vpop.f32.mrb[0].mxu0
          %v642 = vadd.f32 0.0, %v641
          %v643 = vpop.f32.mrb[0].mxu0
          %644 = vmatprep.mubr.bf16.mxu0 0
          %645 = vmatmul.mubr.bf16.gmra.mrb[0].mxu0 %v593
          %v646 = vpop.f32.mrb[0].mxu0
          %v647 = vadd.f32 0.0, %v646
          %v648 = vpop.f32.mrb[0].mxu0
          %v649 = vpop.f32.mrb[0].mxu0
          %v650 = vadd.f32 0.0, %v649
          %v651 = vpop.f32.mrb[0].mxu0
          %652 = vmatprep.mubr.bf16.mxu0 0
          %653 = vmatmul.mubr.bf16.gmra.mrb[0].mxu0 %v596
          %v654 = vpop.f32.mrb[0].mxu0
          %v655 = vadd.f32 0.0, %v654
          %v656 = vpop.f32.mrb[0].mxu0
          %v657 = vpop.f32.mrb[0].mxu0
          %v658 = vadd.f32 0.0, %v657
          %v659 = vpop.f32.mrb[0].mxu0
          %660 = vmatprep.mubr.bf16.mxu0 0
          %661 = vmatmul.mubr.bf16.gmra.mrb[0].mxu0 %v599
          %v662 = vpop.f32.mrb[0].mxu0
          %v663 = vadd.f32 0.0, %v662
          %v664 = vpop.f32.mrb[0].mxu0
          %v665 = vpop.f32.mrb[0].mxu0
          %v666 = vadd.f32 0.0, %v665
          %v667 = vpop.f32.mrb[0].mxu0
          %668 = vdwg.mxu0
          %v669 = vadd.f32 %v559, %v639
          %v670 = vadd.f32 %v560, %v642
          %v671 = vadd.f32 %v561, %v647
          %v672 = vadd.f32 %v562, %v650
          %v673 = vadd.f32 %v563, %v655
          %v674 = vadd.f32 %v564, %v658
          %v675 = vadd.f32 %v565, %v663
          %v676 = vadd.f32 %v566, %v666
          %s677 = scalar_lea.vmem %s1, 16
          %v678 = vld [vmem:[%s677] sm:$0xf]
          %v680 = vunpack.c.l.b16 %v213
          %v681 = vpack.c.b16 %v680, %v680
          %v682 = vshrl.u32 %v585, 16
          %v684 = vshll.u32 %v585, 16
          %v686 = vrot.slane %v684, 1
          %v687 = vor.u32 %v682, %v686
          %v688 = vshll.u32 %v586, 16
          %v690 = vrot.slane %v688, 1
          %v691 = vsel %vm346, %v687, %v690
          %v692 = vshrl.u32 %v586, 16
          %v694 = vor.u32 %v692, %v690
          %v695 = vshll.u32 %v587, 16
          %v697 = vrot.slane %v695, 1
          %v698 = vsel %vm346, %v694, %v697
          %v699 = vshrl.u32 %v587, 16
          %v701 = vor.u32 %v699, %v697
          %v702 = vshll.u32 %v588, 16
          %v704 = vrot.slane %v702, 1
          %v705 = vsel %vm346, %v701, %v704
          %v706 = vshrl.u32 %v588, 16
          %v708 = vor.u32 %v706, %v704
          %v710 = vshll.u32 %v681, 16
          %v712 = vrot.slane %v710, 1
          %v713 = vsel %vm346, %v708, %v712
          %v715 = vsel %vm251, %v691, 0
          %v718 = vsel %vm251, %v698, 0
          %v721 = vsel %vm251, %v705, 0
          %v724 = vsel %vm251, %v713, 0
          %v727 = vsel %vm264, %v678, 0
          %729 = vmatprep.subr.bf16.mxu0 0
          %730 = vmatpush1.bf16.msra.mxu0 %v727
          %731 = vmatprep.subr.bf16.mxu0 0
          %732 = vmatpush1.bf16.msra.mxu0 0
          %733 = vmatprep.subr.bf16.mxu0 0
          %734 = vmatpush1.bf16.msra.mxu0 0
          %735 = vmatprep.subr.bf16.mxu0 0
          %736 = vmatpush1.bf16.msra.mxu0 0
          %737 = vmatprep.subr.bf16.mxu0 0
          %738 = vmatpush1.bf16.msra.mxu0 0
          %739 = vmatprep.subr.bf16.mxu0 0
          %740 = vmatpush1.bf16.msra.mxu0 0
          %741 = vmatprep.subr.bf16.mxu0 0
          %742 = vmatpush1.bf16.msra.mxu0 0
          %743 = vmatprep.subr.bf16.mxu0 0
          %744 = vmatpush1.bf16.msra.mxu0 0
          %745 = vmatprep.subr.bf16.mxu0 0
          %746 = vmatpush1.bf16.msra.mxu0 0
          %747 = vmatprep.subr.bf16.mxu0 0
          %748 = vmatpush1.bf16.msra.mxu0 0
          %749 = vmatprep.subr.bf16.mxu0 0
          %750 = vmatpush1.bf16.msra.mxu0 0
          %751 = vmatprep.subr.bf16.mxu0 0
          %752 = vmatpush1.bf16.msra.mxu0 0
          %753 = vmatprep.subr.bf16.mxu0 0
          %754 = vmatpush1.bf16.msra.mxu0 0
          %755 = vmatprep.subr.bf16.mxu0 0
          %756 = vmatpush1.bf16.msra.mxu0 0
          %757 = vmatprep.subr.bf16.mxu0 0
          %758 = vmatpush1.bf16.msra.mxu0 0
          %759 = vmatprep.subr.bf16.mxu0 0
          %760 = vmatpush1.bf16.msra.mxu0 0
          %761 = vmatprep.mubr.bf16.mxu0 0
          %762 = vmatmul.mubr.bf16.gmra.mrb[0].mxu0 %v715
          %v763 = vpop.f32.mrb[0].mxu0
          %v764 = vadd.f32 0.0, %v763
          %v765 = vpop.f32.mrb[0].mxu0
          %v766 = vpop.f32.mrb[0].mxu0
          %v767 = vadd.f32 0.0, %v766
          %v768 = vpop.f32.mrb[0].mxu0
          %769 = vmatprep.mubr.bf16.mxu0 0
          %770 = vmatmul.mubr.bf16.gmra.mrb[0].mxu0 %v718
          %v771 = vpop.f32.mrb[0].mxu0
          %v772 = vadd.f32 0.0, %v771
          %v773 = vpop.f32.mrb[0].mxu0
          %v774 = vpop.f32.mrb[0].mxu0
          %v775 = vadd.f32 0.0, %v774
          %v776 = vpop.f32.mrb[0].mxu0
          %777 = vmatprep.mubr.bf16.mxu0 0
          %778 = vmatmul.mubr.bf16.gmra.mrb[0].mxu0 %v721
          %v779 = vpop.f32.mrb[0].mxu0
          %v780 = vadd.f32 0.0, %v779
          %v781 = vpop.f32.mrb[0].mxu0
          %v782 = vpop.f32.mrb[0].mxu0
          %v783 = vadd.f32 0.0, %v782
          %v784 = vpop.f32.mrb[0].mxu0
          %785 = vmatprep.mubr.bf16.mxu0 0
          %786 = vmatmul.mubr.bf16.gmra.mrb[0].mxu0 %v724
          %v787 = vpop.f32.mrb[0].mxu0
          %v788 = vadd.f32 0.0, %v787
          %v789 = vpop.f32.mrb[0].mxu0
          %v790 = vpop.f32.mrb[0].mxu0
          %v791 = vadd.f32 0.0, %v790
          %v792 = vpop.f32.mrb[0].mxu0
          %793 = vdwg.mxu0
          %v794 = vadd.f32 %v669, %v764
          %v795 = vadd.f32 %v670, %v767
          %v796 = vadd.f32 %v671, %v772
          %v797 = vadd.f32 %v672, %v775
          %v798 = vadd.f32 %v673, %v780
          %v799 = vadd.f32 %v674, %v783
          %v800 = vadd.f32 %v675, %v788
          %v801 = vadd.f32 %v676, %v791
          %s802 = scalar_lea.vmem %s1, 20
          %v803 = vld [vmem:[%s802] sm:$0xf]
          %v804 = vrot.slane %v585, 1
          %v805 = vrot.slane %v586, 1
          %v806 = vsel %vm469, %v804, %v805
          %v807 = vrot.slane %v587, 1
          %v808 = vsel %vm469, %v805, %v807
          %v809 = vrot.slane %v588, 1
          %v810 = vsel %vm469, %v807, %v809
          %v811 = vrot.slane %v681, 1
          %v812 = vsel %vm469, %v809, %v811
          %v814 = vsel %vm251, %v806, 0
          %v817 = vsel %vm251, %v808, 0
          %v820 = vsel %vm251, %v810, 0
          %v823 = vsel %vm251, %v812, 0
          %v826 = vsel %vm264, %v803, 0
          %828 = vmatprep.subr.bf16.mxu0 0
          %829 = vmatpush1.bf16.msra.mxu0 %v826
          %830 = vmatprep.subr.bf16.mxu0 0
          %831 = vmatpush1.bf16.msra.mxu0 0
          %832 = vmatprep.subr.bf16.mxu0 0
          %833 = vmatpush1.bf16.msra.mxu0 0
          %834 = vmatprep.subr.bf16.mxu0 0
          %835 = vmatpush1.bf16.msra.mxu0 0
          %836 = vmatprep.subr.bf16.mxu0 0
          %837 = vmatpush1.bf16.msra.mxu0 0
          %838 = vmatprep.subr.bf16.mxu0 0
          %839 = vmatpush1.bf16.msra.mxu0 0
          %840 = vmatprep.subr.bf16.mxu0 0
          %841 = vmatpush1.bf16.msra.mxu0 0
          %842 = vmatprep.subr.bf16.mxu0 0
          %843 = vmatpush1.bf16.msra.mxu0 0
          %844 = vmatprep.subr.bf16.mxu0 0
          %845 = vmatpush1.bf16.msra.mxu0 0
          %846 = vmatprep.subr.bf16.mxu0 0
          %847 = vmatpush1.bf16.msra.mxu0 0
          %848 = vmatprep.subr.bf16.mxu0 0
          %849 = vmatpush1.bf16.msra.mxu0 0
          %850 = vmatprep.subr.bf16.mxu0 0
          %851 = vmatpush1.bf16.msra.mxu0 0
          %852 = vmatprep.subr.bf16.mxu0 0
          %853 = vmatpush1.bf16.msra.mxu0 0
          %854 = vmatprep.subr.bf16.mxu0 0
          %855 = vmatpush1.bf16.msra.mxu0 0
          %856 = vmatprep.subr.bf16.mxu0 0
          %857 = vmatpush1.bf16.msra.mxu0 0
          %858 = vmatprep.subr.bf16.mxu0 0
          %859 = vmatpush1.bf16.msra.mxu0 0
          %860 = vmatprep.mubr.bf16.mxu0 0
          %861 = vmatmul.mubr.bf16.gmra.mrb[0].mxu0 %v814
          %v862 = vpop.f32.mrb[0].mxu0
          %v863 = vadd.f32 0.0, %v862
          %v864 = vpop.f32.mrb[0].mxu0
          %v865 = vpop.f32.mrb[0].mxu0
          %v866 = vadd.f32 0.0, %v865
          %v867 = vpop.f32.mrb[0].mxu0
          %868 = vmatprep.mubr.bf16.mxu0 0
          %869 = vmatmul.mubr.bf16.gmra.mrb[0].mxu0 %v817
          %v870 = vpop.f32.mrb[0].mxu0
          %v871 = vadd.f32 0.0, %v870
          %v872 = vpop.f32.mrb[0].mxu0
          %v873 = vpop.f32.mrb[0].mxu0
          %v874 = vadd.f32 0.0, %v873
          %v875 = vpop.f32.mrb[0].mxu0
          %876 = vmatprep.mubr.bf16.mxu0 0
          %877 = vmatmul.mubr.bf16.gmra.mrb[0].mxu0 %v820
          %v878 = vpop.f32.mrb[0].mxu0
          %v879 = vadd.f32 0.0, %v878
          %v880 = vpop.f32.mrb[0].mxu0
          %v881 = vpop.f32.mrb[0].mxu0
          %v882 = vadd.f32 0.0, %v881
          %v883 = vpop.f32.mrb[0].mxu0
          %884 = vmatprep.mubr.bf16.mxu0 0
          %885 = vmatmul.mubr.bf16.gmra.mrb[0].mxu0 %v823
          %v886 = vpop.f32.mrb[0].mxu0
          %v887 = vadd.f32 0.0, %v886
          %v888 = vpop.f32.mrb[0].mxu0
          %v889 = vpop.f32.mrb[0].mxu0
          %v890 = vadd.f32 0.0, %v889
          %v891 = vpop.f32.mrb[0].mxu0
          %892 = vdwg.mxu0
          %v893 = vadd.f32 %v794, %v863
          %v894 = vadd.f32 %v795, %v866
          %v895 = vadd.f32 %v796, %v871
          %v896 = vadd.f32 %v797, %v874
          %v897 = vadd.f32 %v798, %v879
          %v898 = vadd.f32 %v799, %v882
          %v899 = vadd.f32 %v800, %v887
          %v900 = vadd.f32 %v801, %v890
          %s901 = scalar_lea.vmem %s1, 24
          %v902 = vld [vmem:[%s901] sm:$0xf]
          %v911 = vunpack.c.l.b16 %v214
          %v912 = vunpack.c.l.b16 %v215
          %v913 = vunpack.c.l.b16 %v216
          %v914 = vunpack.c.l.b16 %v217
          %v915 = vunpack.c.l.b16 %v218
          %v916 = vunpack.c.l.b16 %v219
          %v917 = vunpack.c.l.b16 %v220
          %v918 = vunpack.c.l.b16 %v221
          %v919 = vpack.c.b16 %v912, %v911
          %v920 = vpack.c.b16 %v914, %v913
          %v921 = vpack.c.b16 %v916, %v915
          %v922 = vpack.c.b16 %v918, %v917
          %v924 = vsel %vm251, %v919, 0
          %v927 = vsel %vm251, %v920, 0
          %v930 = vsel %vm251, %v921, 0
          %v933 = vsel %vm251, %v922, 0
          %v936 = vsel %vm264, %v902, 0
          %938 = vmatprep.subr.bf16.mxu0 0
          %939 = vmatpush1.bf16.msra.mxu0 %v936
          %940 = vmatprep.subr.bf16.mxu0 0
          %941 = vmatpush1.bf16.msra.mxu0 0
          %942 = vmatprep.subr.bf16.mxu0 0
          %943 = vmatpush1.bf16.msra.mxu0 0
          %944 = vmatprep.subr.bf16.mxu0 0
          %945 = vmatpush1.bf16.msra.mxu0 0
          %946 = vmatprep.subr.bf16.mxu0 0
          %947 = vmatpush1.bf16.msra.mxu0 0
          %948 = vmatprep.subr.bf16.mxu0 0
          %949 = vmatpush1.bf16.msra.mxu0 0
          %950 = vmatprep.subr.bf16.mxu0 0
          %951 = vmatpush1.bf16.msra.mxu0 0
          %952 = vmatprep.subr.bf16.mxu0 0
          %953 = vmatpush1.bf16.msra.mxu0 0
          %954 = vmatprep.subr.bf16.mxu0 0
          %955 = vmatpush1.bf16.msra.mxu0 0
          %956 = vmatprep.subr.bf16.mxu0 0
          %957 = vmatpush1.bf16.msra.mxu0 0
          %958 = vmatprep.subr.bf16.mxu0 0
          %959 = vmatpush1.bf16.msra.mxu0 0
          %960 = vmatprep.subr.bf16.mxu0 0
          %961 = vmatpush1.bf16.msra.mxu0 0
          %962 = vmatprep.subr.bf16.mxu0 0
          %963 = vmatpush1.bf16.msra.mxu0 0
          %964 = vmatprep.subr.bf16.mxu0 0
          %965 = vmatpush1.bf16.msra.mxu0 0
          %966 = vmatprep.subr.bf16.mxu0 0
          %967 = vmatpush1.bf16.msra.mxu0 0
          %968 = vmatprep.subr.bf16.mxu0 0
          %969 = vmatpush1.bf16.msra.mxu0 0
          %970 = vmatprep.mubr.bf16.mxu0 0
          %971 = vmatmul.mubr.bf16.gmra.mrb[0].mxu0 %v924
          %v972 = vpop.f32.mrb[0].mxu0
          %v973 = vadd.f32 0.0, %v972
          %v974 = vpop.f32.mrb[0].mxu0
          %v975 = vpop.f32.mrb[0].mxu0
          %v976 = vadd.f32 0.0, %v975
          %v977 = vpop.f32.mrb[0].mxu0
          %978 = vmatprep.mubr.bf16.mxu0 0
          %979 = vmatmul.mubr.bf16.gmra.mrb[0].mxu0 %v927
          %v980 = vpop.f32.mrb[0].mxu0
          %v981 = vadd.f32 0.0, %v980
          %v982 = vpop.f32.mrb[0].mxu0
          %v983 = vpop.f32.mrb[0].mxu0
          %v984 = vadd.f32 0.0, %v983
          %v985 = vpop.f32.mrb[0].mxu0
          %986 = vmatprep.mubr.bf16.mxu0 0
          %987 = vmatmul.mubr.bf16.gmra.mrb[0].mxu0 %v930
          %v988 = vpop.f32.mrb[0].mxu0
          %v989 = vadd.f32 0.0, %v988
          %v990 = vpop.f32.mrb[0].mxu0
          %v991 = vpop.f32.mrb[0].mxu0
          %v992 = vadd.f32 0.0, %v991
          %v993 = vpop.f32.mrb[0].mxu0
          %994 = vmatprep.mubr.bf16.mxu0 0
          %995 = vmatmul.mubr.bf16.gmra.mrb[0].mxu0 %v933
          %v996 = vpop.f32.mrb[0].mxu0
          %v997 = vadd.f32 0.0, %v996
          %v998 = vpop.f32.mrb[0].mxu0
          %v999 = vpop.f32.mrb[0].mxu0
          %v1000 = vadd.f32 0.0, %v999
          %v1001 = vpop.f32.mrb[0].mxu0
          %1002 = vdwg.mxu0
          %v1003 = vadd.f32 %v893, %v973
          %v1004 = vadd.f32 %v894, %v976
          %v1005 = vadd.f32 %v895, %v981
          %v1006 = vadd.f32 %v896, %v984
          %v1007 = vadd.f32 %v897, %v989
          %v1008 = vadd.f32 %v898, %v992
          %v1009 = vadd.f32 %v899, %v997
          %v1010 = vadd.f32 %v900, %v1000
          %s1011 = scalar_lea.vmem %s1, 28
          %v1012 = vld [vmem:[%s1011] sm:$0xf]
          %v1014 = vunpack.c.l.b16 %v222
          %v1015 = vpack.c.b16 %v1014, %v1014
          %v1016 = vshrl.u32 %v919, 16
          %v1018 = vshll.u32 %v919, 16
          %v1020 = vrot.slane %v1018, 1
          %v1021 = vor.u32 %v1016, %v1020
          %v1022 = vshll.u32 %v920, 16
          %v1024 = vrot.slane %v1022, 1
          %v1025 = vsel %vm346, %v1021, %v1024
          %v1026 = vshrl.u32 %v920, 16
          %v1028 = vor.u32 %v1026, %v1024
          %v1029 = vshll.u32 %v921, 16
          %v1031 = vrot.slane %v1029, 1
          %v1032 = vsel %vm346, %v1028, %v1031
          %v1033 = vshrl.u32 %v921, 16
          %v1035 = vor.u32 %v1033, %v1031
          %v1036 = vshll.u32 %v922, 16
          %v1038 = vrot.slane %v1036, 1
          %v1039 = vsel %vm346, %v1035, %v1038
          %v1040 = vshrl.u32 %v922, 16
          %v1042 = vor.u32 %v1040, %v1038
          %v1044 = vshll.u32 %v1015, 16
          %v1046 = vrot.slane %v1044, 1
          %v1047 = vsel %vm346, %v1042, %v1046
          %v1049 = vsel %vm251, %v1025, 0
          %v1052 = vsel %vm251, %v1032, 0
          %v1055 = vsel %vm251, %v1039, 0
          %v1058 = vsel %vm251, %v1047, 0
          %v1061 = vsel %vm264, %v1012, 0
          %1063 = vmatprep.subr.bf16.mxu0 0
          %1064 = vmatpush1.bf16.msra.mxu0 %v1061
          %1065 = vmatprep.subr.bf16.mxu0 0
          %1066 = vmatpush1.bf16.msra.mxu0 0
          %1067 = vmatprep.subr.bf16.mxu0 0
          %1068 = vmatpush1.bf16.msra.mxu0 0
          %1069 = vmatprep.subr.bf16.mxu0 0
          %1070 = vmatpush1.bf16.msra.mxu0 0
          %1071 = vmatprep.subr.bf16.mxu0 0
          %1072 = vmatpush1.bf16.msra.mxu0 0
          %1073 = vmatprep.subr.bf16.mxu0 0
          %1074 = vmatpush1.bf16.msra.mxu0 0
          %1075 = vmatprep.subr.bf16.mxu0 0
          %1076 = vmatpush1.bf16.msra.mxu0 0
          %1077 = vmatprep.subr.bf16.mxu0 0
          %1078 = vmatpush1.bf16.msra.mxu0 0
          %1079 = vmatprep.subr.bf16.mxu0 0
          %1080 = vmatpush1.bf16.msra.mxu0 0
          %1081 = vmatprep.subr.bf16.mxu0 0
          %1082 = vmatpush1.bf16.msra.mxu0 0
          %1083 = vmatprep.subr.bf16.mxu0 0
          %1084 = vmatpush1.bf16.msra.mxu0 0
          %1085 = vmatprep.subr.bf16.mxu0 0
          %1086 = vmatpush1.bf16.msra.mxu0 0
          %1087 = vmatprep.subr.bf16.mxu0 0
          %1088 = vmatpush1.bf16.msra.mxu0 0
          %1089 = vmatprep.subr.bf16.mxu0 0
          %1090 = vmatpush1.bf16.msra.mxu0 0
          %1091 = vmatprep.subr.bf16.mxu0 0
          %1092 = vmatpush1.bf16.msra.mxu0 0
          %1093 = vmatprep.subr.bf16.mxu0 0
          %1094 = vmatpush1.bf16.msra.mxu0 0
          %1095 = vmatprep.mubr.bf16.mxu0 0
          %1096 = vmatmul.mubr.bf16.gmra.mrb[0].mxu0 %v1049
          %v1097 = vpop.f32.mrb[0].mxu0
          %v1098 = vadd.f32 0.0, %v1097
          %v1099 = vpop.f32.mrb[0].mxu0
          %v1100 = vpop.f32.mrb[0].mxu0
          %v1101 = vadd.f32 0.0, %v1100
          %v1102 = vpop.f32.mrb[0].mxu0
          %1103 = vmatprep.mubr.bf16.mxu0 0
          %1104 = vmatmul.mubr.bf16.gmra.mrb[0].mxu0 %v1052
          %v1105 = vpop.f32.mrb[0].mxu0
          %v1106 = vadd.f32 0.0, %v1105
          %v1107 = vpop.f32.mrb[0].mxu0
          %v1108 = vpop.f32.mrb[0].mxu0
          %v1109 = vadd.f32 0.0, %v1108
          %v1110 = vpop.f32.mrb[0].mxu0
          %1111 = vmatprep.mubr.bf16.mxu0 0
          %1112 = vmatmul.mubr.bf16.gmra.mrb[0].mxu0 %v1055
          %v1113 = vpop.f32.mrb[0].mxu0
          %v1114 = vadd.f32 0.0, %v1113
          %v1115 = vpop.f32.mrb[0].mxu0
          %v1116 = vpop.f32.mrb[0].mxu0
          %v1117 = vadd.f32 0.0, %v1116
          %v1118 = vpop.f32.mrb[0].mxu0
          %1119 = vmatprep.mubr.bf16.mxu0 0
          %1120 = vmatmul.mubr.bf16.gmra.mrb[0].mxu0 %v1058
          %v1121 = vpop.f32.mrb[0].mxu0
          %v1122 = vadd.f32 0.0, %v1121
          %v1123 = vpop.f32.mrb[0].mxu0
          %v1124 = vpop.f32.mrb[0].mxu0
          %v1125 = vadd.f32 0.0, %v1124
          %v1126 = vpop.f32.mrb[0].mxu0
          %1127 = vdwg.mxu0
          %v1128 = vadd.f32 %v1003, %v1098
          %v1129 = vadd.f32 %v1004, %v1101
          %v1130 = vadd.f32 %v1005, %v1106
          %v1131 = vadd.f32 %v1006, %v1109
          %v1132 = vadd.f32 %v1007, %v1114
          %v1133 = vadd.f32 %v1008, %v1117
          %v1134 = vadd.f32 %v1009, %v1122
          %v1135 = vadd.f32 %v1010, %v1125
          %s1136 = scalar_lea.vmem %s1, 32
          %v1137 = vld [vmem:[%s1136] sm:$0xf]
          %v1138 = vrot.slane %v919, 1
          %v1139 = vrot.slane %v920, 1
          %v1140 = vsel %vm469, %v1138, %v1139
          %v1141 = vrot.slane %v921, 1
          %v1142 = vsel %vm469, %v1139, %v1141
          %v1143 = vrot.slane %v922, 1
          %v1144 = vsel %vm469, %v1141, %v1143
          %v1145 = vrot.slane %v1015, 1
          %v1146 = vsel %vm469, %v1143, %v1145
          %v1148 = vsel %vm251, %v1140, 0
          %v1151 = vsel %vm251, %v1142, 0
          %v1154 = vsel %vm251, %v1144, 0
          %v1157 = vsel %vm251, %v1146, 0
          %v1160 = vsel %vm264, %v1137, 0
          %1162 = vmatprep.subr.bf16.mxu0 0
          %1163 = vmatpush1.bf16.msra.mxu0 %v1160
          %1164 = vmatprep.subr.bf16.mxu0 0
          %1165 = vmatpush1.bf16.msra.mxu0 0
          %1166 = vmatprep.subr.bf16.mxu0 0
          %1167 = vmatpush1.bf16.msra.mxu0 0
          %1168 = vmatprep.subr.bf16.mxu0 0
          %1169 = vmatpush1.bf16.msra.mxu0 0
          %1170 = vmatprep.subr.bf16.mxu0 0
          %1171 = vmatpush1.bf16.msra.mxu0 0
          %1172 = vmatprep.subr.bf16.mxu0 0
          %1173 = vmatpush1.bf16.msra.mxu0 0
          %1174 = vmatprep.subr.bf16.mxu0 0
          %1175 = vmatpush1.bf16.msra.mxu0 0
          %1176 = vmatprep.subr.bf16.mxu0 0
          %1177 = vmatpush1.bf16.msra.mxu0 0
          %1178 = vmatprep.subr.bf16.mxu0 0
          %1179 = vmatpush1.bf16.msra.mxu0 0
          %1180 = vmatprep.subr.bf16.mxu0 0
          %1181 = vmatpush1.bf16.msra.mxu0 0
          %1182 = vmatprep.subr.bf16.mxu0 0
          %1183 = vmatpush1.bf16.msra.mxu0 0
          %1184 = vmatprep.subr.bf16.mxu0 0
          %1185 = vmatpush1.bf16.msra.mxu0 0
          %1186 = vmatprep.subr.bf16.mxu0 0
          %1187 = vmatpush1.bf16.msra.mxu0 0
          %1188 = vmatprep.subr.bf16.mxu0 0
          %1189 = vmatpush1.bf16.msra.mxu0 0
          %1190 = vmatprep.subr.bf16.mxu0 0
          %1191 = vmatpush1.bf16.msra.mxu0 0
          %1192 = vmatprep.subr.bf16.mxu0 0
          %1193 = vmatpush1.bf16.msra.mxu0 0
          %1194 = vmatprep.mubr.bf16.mxu0 0
          %1195 = vmatmul.mubr.bf16.gmra.mrb[0].mxu0 %v1148
          %v1196 = vpop.f32.mrb[0].mxu0
          %v1197 = vadd.f32 0.0, %v1196
          %v1198 = vpop.f32.mrb[0].mxu0
          %v1199 = vpop.f32.mrb[0].mxu0
          %v1200 = vadd.f32 0.0, %v1199
          %v1201 = vpop.f32.mrb[0].mxu0
          %1202 = vmatprep.mubr.bf16.mxu0 0
          %1203 = vmatmul.mubr.bf16.gmra.mrb[0].mxu0 %v1151
          %v1204 = vpop.f32.mrb[0].mxu0
          %v1205 = vadd.f32 0.0, %v1204
          %v1206 = vpop.f32.mrb[0].mxu0
          %v1207 = vpop.f32.mrb[0].mxu0
          %v1208 = vadd.f32 0.0, %v1207
          %v1209 = vpop.f32.mrb[0].mxu0
          %1210 = vmatprep.mubr.bf16.mxu0 0
          %1211 = vmatmul.mubr.bf16.gmra.mrb[0].mxu0 %v1154
          %v1212 = vpop.f32.mrb[0].mxu0
          %v1213 = vadd.f32 0.0, %v1212
          %v1214 = vpop.f32.mrb[0].mxu0
          %v1215 = vpop.f32.mrb[0].mxu0
          %v1216 = vadd.f32 0.0, %v1215
          %v1217 = vpop.f32.mrb[0].mxu0
          %1218 = vmatprep.mubr.bf16.mxu0 0
          %1219 = vmatmul.mubr.bf16.gmra.mrb[0].mxu0 %v1157
          %v1220 = vpop.f32.mrb[0].mxu0
          %v1221 = vadd.f32 0.0, %v1220
          %v1222 = vpop.f32.mrb[0].mxu0
          %v1223 = vpop.f32.mrb[0].mxu0
          %v1224 = vadd.f32 0.0, %v1223
          %v1225 = vpop.f32.mrb[0].mxu0
          %1226 = vdwg.mxu0
          %v1227 = vadd.f32 %v1128, %v1197
          %v1228 = vadd.f32 %v1129, %v1200
          %v1229 = vadd.f32 %v1130, %v1205
          %v1230 = vadd.f32 %v1131, %v1208
          %v1231 = vadd.f32 %v1132, %v1213
          %v1232 = vadd.f32 %v1133, %v1216
          %v1233 = vadd.f32 %v1134, %v1221
          %v1234 = vadd.f32 %v1135, %v1224
          %v1235 = vmax.f32 %v1227, 0.0
          %v1236 = vmax.f32 %v1228, 0.0
          %v1237 = vmax.f32 %v1229, 0.0
          %v1238 = vmax.f32 %v1230, 0.0
          %v1239 = vmax.f32 %v1231, 0.0
          %v1240 = vmax.f32 %v1232, 0.0
          %v1241 = vmax.f32 %v1233, 0.0
          %v1242 = vmax.f32 %v1234, 0.0
          %v1243 = vpack.c.bf16 %v1236, %v1235
          %v1244 = vpack.c.bf16 %v1238, %v1237
          %v1245 = vpack.c.bf16 %v1240, %v1239
          %v1246 = vpack.c.bf16 %v1242, %v1241
          %v1251 = vunpack.c.l.b16 %v1243
          %v1252 = vunpack.c.h.b16 %v1243
          %v1253 = vunpack.c.l.b16 %v1244
          %v1254 = vunpack.c.h.b16 %v1244
          %v1255 = vunpack.c.l.b16 %v1245
          %v1256 = vunpack.c.h.b16 %v1245
          %v1257 = vunpack.c.l.b16 %v1246
          %v1258 = vunpack.c.h.b16 %v1246
          %v1259 = vpack.c.b16 %v1251, %v1251
          %v1260 = vpack.c.b16 %v1252, %v1252
          %v1261 = vpack.c.b16 %v1253, %v1253
          %v1262 = vpack.c.b16 %v1254, %v1254
          %v1263 = vpack.c.b16 %v1255, %v1255
          %v1264 = vpack.c.b16 %v1256, %v1256
          %v1265 = vpack.c.b16 %v1257, %v1257
          %v1266 = vpack.c.b16 %v1258, %v1258
          %s1275 = smul.u32 %s186, 8
          %s1276 = smul.addr %s1275, 4
          %s1277 = scalar_lea.vmem %s177, %s1276 [#allocation2]
          %vm1278 = vcmask 519168
          %1279 = vst.msk [vmem:[%s1277] sm:$0xf] %vm1278, %v1259
          %1280 = vst.msk [vmem:[%s1277 + $0x4] sm:$0xf] %vm1278, %v1260
          %1281 = vst.msk [vmem:[%s1277 + $0x8] sm:$0xf] %vm1278, %v1261
          %1282 = vst.msk [vmem:[%s1277 + $0xc] sm:$0xf] %vm1278, %v1262
          %1283 = vst.msk [vmem:[%s1277 + $0x10] sm:$0xf] %vm1278, %v1263
          %1284 = vst.msk [vmem:[%s1277 + $0x14] sm:$0xf] %vm1278, %v1264
          %1285 = vst.msk [vmem:[%s1277 + $0x18] sm:$0xf] %vm1278, %v1265
          %1286 = vst.msk [vmem:[%s1277 + $0x1c] sm:$0xf] %vm1278, %v1266
        $region37: #{conv3x3_relu.1} parent=31 // loop_footer
          %s190 = sadd.s32 1, %s186
        $region38: #{conv3x3_relu.1} parent=31 // loop_footer_branch
          %185 = sbr.rel target = $region34
        $region39: #{conv3x3_relu.1} parent=31 // loop_exit
          _
        %s1287 = sand.u32 %s107, 1
        %s1288 = scalar_lea.sflag [#allocation3], %s1287
        %s1289 = sand.u32 %s107, 1
        %s1290 = smul.addr %s1289, 2048
        %s1291 = scalar_lea.vmem [#allocation2], %s1290
        // Predicated region
        $region40: #{conv3x3_relu.1} parent=31 // pred_check
          %p1292 = pneg %p117
        $region41: #{conv3x3_relu.1} parent=31 // pred_check_branch
          %1294 = sbr.rel (%p1292) target = $region43
        $region42: #{conv3x3_relu.1} parent=31 // pred_region
          %s1295 = smul.u32 64, %s22
          %s1297 = ssub.s32 32768, 32768
          %1298 = vsyncadd %s1288, %s1297
          %s1299 = smul.addr %s1295, 8
          %s1300 = smul.addr %s21, 512
          %s1301 = sadd.s32 %s1299, %s1300
          %s1302 = smul.addr %s1301, 64
          %s1303 = scalar_lea.hbm %s3, %s1302
          %s1304 = sshll.u32 %s1291, 4
          %s1305 = int_to_ptr.vmem [resolvable:$true] %s1304
          %1310 = dma.vmem_to_hbm [thread:$0]  %s1305, 32768, %s1303, %s1288, 64, 64, 4
        $region43: #{conv3x3_relu.1} parent=31 // pred_fallthru
          _
      $region32: #{conv3x3_relu.1} parent=5 // pred_fallthru
        _
      %p1311 = scmp.le.s32.totalorder 2, %s12
      // Predicated region
      $region44: #{conv3x3_relu.1} parent=5 // pred_check
        %p1312 = pneg %p1311
      $region45: #{conv3x3_relu.1} parent=5 // pred_check_branch
        %1314 = sbr.rel (%p1312) target = $region47
      $region46: #{conv3x3_relu.1} parent=5 // pred_region
        %s1315 = ssub.s32 %s12, 2
        // Predicated region
        $region48: #{conv3x3_relu.1} parent=46 // pred_check
          %p1316 = pneg %p123
        $region49: #{conv3x3_relu.1} parent=46 // pred_check_branch
          %1318 = sbr.rel (%p1316) target = $region51
        $region50: #{conv3x3_relu.1} parent=46 // pred_region
          %s1319 = sand.u32 %s108, 1
          %s1320 = scalar_lea.sflag [#allocation3], %s1319
          %s1321 = sand.u32 %s108, 1
          %s1322 = smul.addr %s1321, 2048
          %s1323 = scalar_lea.vmem [#allocation2], %s1322
          %1324 = dma.done %s1320, 32768
        $region51: #{conv3x3_relu.1} parent=46 // pred_fallthru
          _
      $region47: #{conv3x3_relu.1} parent=5 // pred_fallthru
        _
    $region6: #{conv3x3_relu.1} parent=1 // loop_footer
      %s16 = sadd.s32 1, %s12
    $region7: #{conv3x3_relu.1} parent=1 // loop_footer_branch
      %11 = sbr.rel target = $region3
    $region8: #{conv3x3_relu.1} parent=1 // loop_exit
      _
    %1325 = vsyncpa [#allocation3], 1
    %s1326 = scalar_lea.sflag [#allocation3], 1
    %1327 = vsyncpa %s1326, 1

</llo_original>
